<compile_context>
chip_gen: v5e
topology: v5e:2x2
jax: 0.10.0
libtpu: 0.0.40
codegen_flags: <defaults>
</compile_context>

<pallas_src>
import math
import functools

import jax
import jax.numpy as jnp
from jax import lax
from jax.experimental import pallas as pl
from jax.experimental.pallas import tpu as pltpu

_SQRT_HALF = math.sqrt(0.5)


def _residual_glu_kernel(
    x_ref,      # (tT, C_res)                current time-tile of x (also the residual)
    c_ref,      # (tT, C_cin)                local conditioning tile
    wconv_ref,  # (k, C_res, C_gate)         dilated conv weights, tap-major (compute dtype)
    bconv_ref,  # (1, C_gate)                f32
    wc_ref,     # (C_cin, C_gate)            conv1x1c weights, no bias (compute dtype)
    wso_ref,    # (C_half, C_skip + C_res)   fused [skip | out] 1x1 weights (compute dtype)
    bso_ref,    # (1, C_skip + C_res)        f32
    o_ref,      # (tT, C_skip + C_res)       fused output slab
    xwin_ref,   # (pad + tT, C_res)          persistent causal window (carried across tiles)
    *,
    dilation: int,
    pad: int,
    c_skip: int,
    compute_dtype,
):
    t = pl.program_id(1)
    tT = x_ref.shape[0]
    k = wconv_ref.shape[0]
    c_gate = wconv_ref.shape[2]
    c_half = c_gate // 2

    xblk = x_ref[...]                                    # residual branch (original dtype)

    if pad > 0:
        # First time-tile of every sequence: causal zero history.
        @pl.when(t == 0)
        def _():
            xwin_ref[0:pad, :] = jnp.zeros((pad, xblk.shape[1]), xwin_ref.dtype)

    # Append the current tile behind the carried halo.
    xwin_ref[pad:pad + tT, :] = xblk
    xw = xwin_ref[...]                                   # (pad + tT, C_res)
    xw_c = xw.astype(compute_dtype)                      # MXU input dtype (f32 acc below)

    # Dilated causal conv = k tap-wise matmuls on statically shifted windows,
    # plus the 1x1 conditioning projection, all accumulated in f32 on the MXU.
    acc = jnp.zeros((tT, c_gate), jnp.float32)
    for j in range(k):
        off = j * dilation                               # static python int -> static slice
        acc = acc + jnp.dot(xw_c[off:off + tT, :], wconv_ref[j],
                            preferred_element_type=jnp.float32)
    acc = acc + jnp.dot(c_ref[...].astype(compute_dtype), wc_ref[...],
                        preferred_element_type=jnp.float32)
    acc = acc + bconv_ref[...]

    # GLU gate in f32 (VPU/EUP).
    # TODO(synk): if c_half is not a multiple of 128 at production sizes, pre-split the
    # gate weights into a/b halves instead of slicing the (tT, c_gate) activation here.
    a = acc[:, :c_half]
    b = acc[:, c_half:]
    g = jnp.tanh(a) * jax.nn.sigmoid(b)

    # Fused skip/out projection: one wide-N MXU pass, lane-sliced afterwards.
    proj = jnp.dot(g.astype(compute_dtype), wso_ref[...],
                   preferred_element_type=jnp.float32) + bso_ref[...]
    skip = proj[:, :c_skip]
    outp = (proj[:, c_skip:] + xblk.astype(jnp.float32)) * jnp.float32(_SQRT_HALF)

    o_ref[:, :c_skip] = skip.astype(o_ref.dtype)
    o_ref[:, c_skip:] = outp.astype(o_ref.dtype)

    if pad > 0:
        # Carry the trailing `pad` rows of the window for the next time-tile (causal halo).
        xwin_ref[0:pad, :] = xw[tT:tT + pad, :]


def residual_conv1d_glu(x_ntc, c_ntc, params, *, kernel_size, dilation, causal=True,
                        time_tile=None, compute_dtype=jnp.bfloat16):
    """x_ntc: (B, T, C_res), c_ntc: (B, T, C_cin). Returns (out, skip) in (B, T, C)."""
    assert causal, "only the causal path is implemented"
    B, T, c_res = x_ntc.shape
    c_cin = c_ntc.shape[-1]
    w_conv = params["w_conv"]                  # (k, C_res, C_gate)
    k, _, c_gate = w_conv.shape
    assert k == kernel_size
    c_half = c_gate // 2
    c_skip = params["w_skip"].shape[-1]
    c_total = c_skip + c_res
    pad = (kernel_size - 1) * dilation

    # Time-tile: multiple of 8 sublanes, big enough to amortize per-step overhead,
    # small enough to keep double-buffering alive in VMEM (v7x has 64 MiB per TC).
    if time_tile is None:
        time_tile = 512
    tT = min(time_tile, T)
    if tT < T:
        tT = max(8, (tT // 8) * 8)
    n_t = -(-T // tT)
    T_pad = n_t * tT
    if T_pad != T:
        # Only hit when T is not a multiple of the tile; trailing rows are discarded below.
        x_ntc = jnp.pad(x_ntc, ((0, 0), (0, T_pad - T), (0, 0)))
        c_ntc = jnp.pad(c_ntc, ((0, 0), (0, T_pad - T), (0, 0)))

    # Weights go to the MXU in `compute_dtype` (bf16 by default); biases/accumulation stay f32.
    cd = jnp.dtype(compute_dtype)
    w_conv_c = w_conv.astype(cd)
    w_c_c = params["w_c"].astype(cd)
    w_so = jnp.concatenate([params["w_skip"], params["w_out"]], axis=1).astype(cd)
    b_conv = params["b_conv"].reshape(1, c_gate).astype(jnp.float32)
    b_so = jnp.concatenate([params["b_skip"], params["b_out"]]).reshape(1, c_total)
    b_so = b_so.astype(jnp.float32)

    kernel = functools.partial(_residual_glu_kernel, dilation=dilation, pad=pad,
                               c_skip=c_skip, compute_dtype=cd)

    itemsize = jnp.dtype(x_ntc.dtype).itemsize
    flops = int(2 * B * T_pad * c_gate * (k * c_res + c_cin)
                + 2 * B * T_pad * c_half * c_total)
    transcendentals = int(2 * B * T_pad * c_half)           # tanh + sigmoid
    bytes_accessed = int(x_ntc.size * itemsize + c_ntc.size * jnp.dtype(c_ntc.dtype).itemsize
                         + B * T_pad * c_total * itemsize
                         + (w_conv_c.size + w_c_c.size + w_so.size) * cd.itemsize
                         + (b_conv.size + b_so.size) * 4)

    fused = pl.pallas_call(
        kernel,
        out_shape=jax.ShapeDtypeStruct((B, T_pad, c_total), x_ntc.dtype),
        grid_spec=pltpu.PrefetchScalarGridSpec(
            num_scalar_prefetch=0,
            grid=(B, n_t),
            in_specs=[
                pl.BlockSpec((None, tT, c_res), lambda b, t: (b, t, 0)),
                pl.BlockSpec((None, tT, c_cin), lambda b, t: (b, t, 0)),
                pl.BlockSpec((k, c_res, c_gate), lambda b, t: (0, 0, 0)),
                pl.BlockSpec((1, c_gate), lambda b, t: (0, 0)),
                pl.BlockSpec((c_cin, c_gate), lambda b, t: (0, 0)),
                pl.BlockSpec((c_half, c_total), lambda b, t: (0, 0)),
                pl.BlockSpec((1, c_total), lambda b, t: (0, 0)),
            ],
            out_specs=pl.BlockSpec((None, tT, c_total), lambda b, t: (b, t, 0)),
            scratch_shapes=[pltpu.VMEM((pad + tT, c_res), x_ntc.dtype)],
        ),
        compiler_params=pltpu.CompilerParams(
            dimension_semantics=("parallel", "arbitrary"),
            vmem_limit_bytes=32 * 1024 * 1024,
        ),
        cost_estimate=pl.CostEstimate(
            flops=flops,
            transcendentals=transcendentals,
            bytes_accessed=bytes_accessed,
        ),
    )(x_ntc, c_ntc, w_conv_c, b_conv, w_c_c, w_so, b_so)

    fused = fused[:, :T, :]
    skip = fused[..., :c_skip]
    out = fused[..., c_skip:]
    return out, skip


def _reference(x_ntc, c_ntc, params, *, kernel_size, dilation):
    """Pure-JAX reference matching the PyTorch forward (eval mode)."""
    B, T, c_res = x_ntc.shape
    c_gate = params["w_conv"].shape[-1]
    c_half = c_gate // 2
    pad = (kernel_size - 1) * dilation

    # PyTorch layout: NCW input, weight (C_out, C_in, k).
    x_ncw = jnp.transpose(x_ntc, (0, 2, 1))
    c_ncw = jnp.transpose(c_ntc, (0, 2, 1))
    w_torch = jnp.transpose(params["w_conv"], (2, 1, 0))  # (C_gate, C_res, k)

    y = lax.conv_general_dilated(
        x_ncw, w_torch, window_strides=(1,), padding=[(pad, pad)],
        rhs_dilation=(dilation,),
        dimension_numbers=("NCH", "OIH", "NCH"))
    y = y + params["b_conv"][None, :, None]
    y = y[:, :, :T]  # causal truncation

    a, b = y[:, :c_half, :], y[:, c_half:, :]
    cp = jnp.einsum("oc,bct->bot", params["w_c"].T, c_ncw)
    ca, cb = cp[:, :c_half, :], cp[:, c_half:, :]
    g = jnp.tanh(a + ca) * jax.nn.sigmoid(b + cb)
    s = jnp.einsum("oc,bct->bot", params["w_skip"].T, g) + params["b_skip"][None, :, None]
    o = jnp.einsum("oc,bct->bot", params["w_out"].T, g) + params["b_out"][None, :, None]
    o = (o + x_ncw) * math.sqrt(0.5)
    return jnp.transpose(o, (0, 2, 1)), jnp.transpose(s, (0, 2, 1))


def init_params(key, residual_channels, gate_channels, kernel_size,
                skip_out_channels, cin_channels):
    """Deterministic synthetic init (kaiming-ish scale; biases zero like the PyTorch init)."""
    ks = jax.random.split(key, 4)
    c_half = gate_channels // 2

    def kaiming(k, shape, fan_in):
        return jax.random.normal(k, shape, jnp.float32) * math.sqrt(2.0 / fan_in)

    return {
        # stored tap-major / channels-last: (k, C_in, C_out)
        "w_conv": kaiming(ks[0], (kernel_size, residual_channels, gate_channels),
                          residual_channels * kernel_size),
        "b_conv": jnp.zeros((gate_channels,), jnp.float32),
        "w_c": kaiming(ks[1], (cin_channels, gate_channels), cin_channels),
        "w_skip": kaiming(ks[2], (c_half, skip_out_channels), c_half),
        "b_skip": jnp.zeros((skip_out_channels,), jnp.float32),
        "w_out": kaiming(ks[3], (c_half, residual_channels), c_half),
        "b_out": jnp.zeros((residual_channels,), jnp.float32),
    }
    # TODO(synk): weight_norm is an identity reparameterization at init, so it is folded
    # into the plain weights here; F.dropout is the identity in eval mode (training=False).


if __name__ == "__main__":
    # Small shapes consistent with the module.
    B, T = 2, 16
    residual_channels = 8
    gate_channels = 16
    skip_out_channels = 8
    cin_channels = 4
    kernel_size = 3
    dilation = 2

    key = jax.random.PRNGKey(0)
    kx, kc, kp = jax.random.split(key, 3)
    x = jax.random.normal(kx, (B, T, residual_channels), jnp.float32)   # (B, T, C_res)
    c = jax.random.normal(kc, (B, T, cin_channels), jnp.float32)        # (B, T, C_cin)
    params = init_params(kp, residual_channels, gate_channels, kernel_size,
                         skip_out_channels, cin_channels)

    ref_out, ref_skip = _reference(x, c, params,
                                   kernel_size=kernel_size, dilation=dilation)

    # 1) f32 compute path, tiled along T (tT=8 < T, so the causal halo carry across tiles
    #    is exercised): tight tolerance against the pure-JAX reference.
    out32, skip32 = residual_conv1d_glu(x, c, params, kernel_size=kernel_size,
                                        dilation=dilation, time_tile=8,
                                        compute_dtype=jnp.float32)
    out32 = jax.block_until_ready(out32)
    skip32 = jax.block_until_ready(skip32)
    assert jnp.allclose(out32, ref_out, rtol=1e-4, atol=1e-4), "f32 residual output mismatch"
    assert jnp.allclose(skip32, ref_skip, rtol=1e-4, atol=1e-4), "f32 skip output mismatch"

    # 2) Default bf16-MXU path (f32 accumulation): loose tolerance due to bf16 matmul inputs.
    out16, skip16 = residual_conv1d_glu(x, c, params, kernel_size=kernel_size,
                                        dilation=dilation, time_tile=8)
    out16 = jax.block_until_ready(out16)
    skip16 = jax.block_until_ready(skip16)
    assert jnp.allclose(out16, ref_out, rtol=1e-1, atol=1e-1), "bf16 residual output mismatch"
    assert jnp.allclose(skip16, ref_skip, rtol=1e-1, atol=1e-1), "bf16 skip output mismatch"

    print("KERNEL_OK")
</pallas_src>

<mosaic_0001>
module attributes {stable_mosaic.version = 11 : i64} {
  func.func @_residual_glu_kernel(%arg0: i32, %arg1: i32, %arg2: memref<1x8x8xf32, #tpu.memory_space<vmem>>, %arg3: memref<1x8x4xf32, #tpu.memory_space<vmem>>, %arg4: memref<3x8x16xf32, #tpu.memory_space<vmem>>, %arg5: memref<1x16xf32, #tpu.memory_space<vmem>>, %arg6: memref<4x16xf32, #tpu.memory_space<vmem>>, %arg7: memref<8x16xf32, #tpu.memory_space<vmem>>, %arg8: memref<1x16xf32, #tpu.memory_space<vmem>>, %arg9: memref<1x8x16xf32, #tpu.memory_space<vmem>>, %arg10: memref<12x8xf32, #tpu.memory_space<vmem>>) attributes {dimension_semantics = [#tpu.dimension_semantics<parallel>, #tpu.dimension_semantics<arbitrary>], iteration_bounds = array<i64: 2, 2>, scalar_prefetch = 0 : i64, scratch_operands = 1 : i64, tpu.core_type = #tpu.core_type<tc>, window_params = [{transform_indices = @transform_0, window_bounds = array<i64: 1, 8, 8>}, {transform_indices = @transform_1, window_bounds = array<i64: 1, 8, 4>}, {pipeline_mode = #tpu.pipeline_mode<synchronous>, transform_indices = @transform_2, window_bounds = array<i64: 3, 8, 16>}, {pipeline_mode = #tpu.pipeline_mode<synchronous>, transform_indices = @transform_3, window_bounds = array<i64: 1, 16>}, {pipeline_mode = #tpu.pipeline_mode<synchronous>, transform_indices = @transform_4, window_bounds = array<i64: 4, 16>}, {pipeline_mode = #tpu.pipeline_mode<synchronous>, transform_indices = @transform_5, window_bounds = array<i64: 8, 16>}, {pipeline_mode = #tpu.pipeline_mode<synchronous>, transform_indices = @transform_6, window_bounds = array<i64: 1, 16>}, {transform_indices = @transform_7, window_bounds = array<i64: 1, 8, 16>}]} {
    %c0 = arith.constant 0 : index
    %c0_0 = arith.constant 0 : index
    %c0_1 = arith.constant 0 : index
    %0 = vector.load %arg2[%c0, %c0_0, %c0_1] : memref<1x8x8xf32, #tpu.memory_space<vmem>>, vector<1x8x8xf32>
    %1 = vector.shape_cast %0 : vector<1x8x8xf32> to vector<8x8xf32>
    %c0_i32 = arith.constant 0 : i32
    %2 = arith.cmpi eq, %arg1, %c0_i32 : i32
    %3 = arith.extui %2 : i1 to i32
    %c0_i32_2 = arith.constant 0 : i32
    %4 = arith.cmpi ne, %3, %c0_i32_2 : i32
    scf.if %4 {
      %cst_38 = arith.constant 0.000000e+00 : f32
      %58 = vector.broadcast %cst_38 : f32 to vector<4x8xf32>
      %c0_39 = arith.constant 0 : index
      %c0_40 = arith.constant 0 : index
      %59 = vector.load %arg10[%c0_39, %c0_40] : memref<12x8xf32, #tpu.memory_space<vmem>>, vector<4x8xf32>
      tpu.vector_store %arg10[%c0_39, %c0_40], %58 {strides = array<i32>} : memref<12x8xf32, #tpu.memory_space<vmem>>, vector<4x8xf32>,
    } else {
    }
    %c4 = arith.constant 4 : index
    %c0_3 = arith.constant 0 : index
    %5 = vector.load %arg10[%c4, %c0_3] : memref<12x8xf32, #tpu.memory_space<vmem>>, vector<8x8xf32>
    tpu.vector_store %arg10[%c4, %c0_3], %1 {strides = array<i32>} : memref<12x8xf32, #tpu.memory_space<vmem>>, vector<8x8xf32>,
    %c0_4 = arith.constant 0 : index
    %c0_5 = arith.constant 0 : index
    %6 = vector.load %arg10[%c0_4, %c0_5] : memref<12x8xf32, #tpu.memory_space<vmem>>, vector<12x8xf32>
    %cst = arith.constant 0.000000e+00 : f32
    %7 = vector.broadcast %cst : f32 to vector<8x16xf32>
    %8 = vector.extract_strided_slice %6 {offsets = [0, 0], sizes = [8, 8], strides = [1, 1]} : vector<12x8xf32> to vector<8x8xf32>
    %c0_6 = arith.constant 0 : index
    %c0_7 = arith.constant 0 : index
    %c0_8 = arith.constant 0 : index
    %9 = vector.load %arg4[%c0_6, %c0_7, %c0_8] : memref<3x8x16xf32, #tpu.memory_space<vmem>>, vector<1x8x16xf32>
    %10 = vector.shape_cast %9 : vector<1x8x16xf32> to vector<8x16xf32>
    %cst_9 = arith.constant dense<0.000000e+00> : vector<8x16xf32>
    %11 = tpu.matmul %8, %10, %cst_9 {dimension_numbers = #tpu.dot_dimension_numbers<[1], [0], [0], [1], [0, 0, 1, 1], [], []>} : vector<8x8xf32>, vector<8x16xf32>, vector<8x16xf32> -> vector<8x16xf32>
    %12 = arith.addf %7, %11 : vector<8x16xf32>
    %13 = vector.extract_strided_slice %6 {offsets = [2, 0], sizes = [8, 8], strides = [1, 1]} : vector<12x8xf32> to vector<8x8xf32>
    %c1 = arith.constant 1 : index
    %c0_10 = arith.constant 0 : index
    %c0_11 = arith.constant 0 : index
    %14 = vector.load %arg4[%c1, %c0_10, %c0_11] : memref<3x8x16xf32, #tpu.memory_space<vmem>>, vector<1x8x16xf32>
    %15 = vector.shape_cast %14 : vector<1x8x16xf32> to vector<8x16xf32>
    %cst_12 = arith.constant dense<0.000000e+00> : vector<8x16xf32>
    %16 = tpu.matmul %13, %15, %cst_12 {dimension_numbers = #tpu.dot_dimension_numbers<[1], [0], [0], [1], [0, 0, 1, 1], [], []>} : vector<8x8xf32>, vector<8x16xf32>, vector<8x16xf32> -> vector<8x16xf32>
    %17 = arith.addf %12, %16 : vector<8x16xf32>
    %18 = vector.extract_strided_slice %6 {offsets = [4, 0], sizes = [8, 8], strides = [1, 1]} : vector<12x8xf32> to vector<8x8xf32>
    %c2 = arith.constant 2 : index
    %c0_13 = arith.constant 0 : index
    %c0_14 = arith.constant 0 : index
    %19 = vector.load %arg4[%c2, %c0_13, %c0_14] : memref<3x8x16xf32, #tpu.memory_space<vmem>>, vector<1x8x16xf32>
    %20 = vector.shape_cast %19 : vector<1x8x16xf32> to vector<8x16xf32>
    %cst_15 = arith.constant dense<0.000000e+00> : vector<8x16xf32>
    %21 = tpu.matmul %18, %20, %cst_15 {dimension_numbers = #tpu.dot_dimension_numbers<[1], [0], [0], [1], [0, 0, 1, 1], [], []>} : vector<8x8xf32>, vector<8x16xf32>, vector<8x16xf32> -> vector<8x16xf32>
    %22 = arith.addf %17, %21 : vector<8x16xf32>
    %c0_16 = arith.constant 0 : index
    %c0_17 = arith.constant 0 : index
    %c0_18 = arith.constant 0 : index
    %23 = vector.load %arg3[%c0_16, %c0_17, %c0_18] : memref<1x8x4xf32, #tpu.memory_space<vmem>>, vector<1x8x4xf32>
    %24 = vector.shape_cast %23 : vector<1x8x4xf32> to vector<8x4xf32>
    %c0_19 = arith.constant 0 : index
    %c0_20 = arith.constant 0 : index
    %25 = vector.load %arg6[%c0_19, %c0_20] : memref<4x16xf32, #tpu.memory_space<vmem>>, vector<4x16xf32>
    %cst_21 = arith.constant dense<0.000000e+00> : vector<8x16xf32>
    %26 = tpu.matmul %24, %25, %cst_21 {dimension_numbers = #tpu.dot_dimension_numbers<[1], [0], [0], [1], [0, 0, 1, 1], [], []>} : vector<8x4xf32>, vector<4x16xf32>, vector<8x16xf32> -> vector<8x16xf32>
    %27 = arith.addf %22, %26 : vector<8x16xf32>
    %c0_22 = arith.constant 0 : index
    %c0_23 = arith.constant 0 : index
    %28 = vector.load %arg5[%c0_22, %c0_23] : memref<1x16xf32, #tpu.memory_space<vmem>>, vector<1x16xf32>
    %29 = vector.broadcast %28 : vector<1x16xf32> to vector<8x16xf32>
    %30 = arith.addf %27, %29 : vector<8x16xf32>
    %31 = vector.extract_strided_slice %30 {offsets = [0, 0], sizes = [8, 8], strides = [1, 1]} : vector<8x16xf32> to vector<8x8xf32>
    %32 = vector.extract_strided_slice %30 {offsets = [0, 8], sizes = [8, 8], strides = [1, 1]} : vector<8x16xf32> to vector<8x8xf32>
    %33 = math.tanh %31 : vector<8x8xf32>
    %34 = arith.negf %32 : vector<8x8xf32>
    %35 = math.exp %34 : vector<8x8xf32>
    %cst_24 = arith.constant 1.000000e+00 : f32
    %36 = vector.broadcast %cst_24 : f32 to vector<8x8xf32>
    %37 = arith.addf %36, %35 : vector<8x8xf32>
    %38 = arith.divf %36, %37 : vector<8x8xf32>
    %39 = arith.mulf %33, %38 : vector<8x8xf32>
    %c0_25 = arith.constant 0 : index
    %c0_26 = arith.constant 0 : index
    %40 = vector.load %arg7[%c0_25, %c0_26] : memref<8x16xf32, #tpu.memory_space<vmem>>, vector<8x16xf32>
    %cst_27 = arith.constant dense<0.000000e+00> : vector<8x16xf32>
    %41 = tpu.matmul %39, %40, %cst_27 {dimension_numbers = #tpu.dot_dimension_numbers<[1], [0], [0], [1], [0, 0, 1, 1], [], []>} : vector<8x8xf32>, vector<8x16xf32>, vector<8x16xf32> -> vector<8x16xf32>
    %c0_28 = arith.constant 0 : index
    %c0_29 = arith.constant 0 : index
    %42 = vector.load %arg8[%c0_28, %c0_29] : memref<1x16xf32, #tpu.memory_space<vmem>>, vector<1x16xf32>
    %43 = vector.broadcast %42 : vector<1x16xf32> to vector<8x16xf32>
    %44 = arith.addf %41, %43 : vector<8x16xf32>
    %45 = vector.extract_strided_slice %44 {offsets = [0, 0], sizes = [8, 8], strides = [1, 1]} : vector<8x16xf32> to vector<8x8xf32>
    %46 = vector.extract_strided_slice %44 {offsets = [0, 8], sizes = [8, 8], strides = [1, 1]} : vector<8x16xf32> to vector<8x8xf32>
    %47 = arith.addf %46, %1 : vector<8x8xf32>
    %cst_30 = arith.constant 0.707106769 : f32
    %48 = vector.broadcast %cst_30 : f32 to vector<8x8xf32>
    %49 = arith.mulf %47, %48 : vector<8x8xf32>
    %c0_31 = arith.constant 0 : index
    %c0_32 = arith.constant 0 : index
    %c0_33 = arith.constant 0 : index
    %50 = vector.load %arg9[%c0_31, %c0_32, %c0_33] : memref<1x8x16xf32, #tpu.memory_space<vmem>>, vector<1x8x8xf32>
    %51 = vector.shape_cast %50 : vector<1x8x8xf32> to vector<8x8xf32>
    %52 = vector.shape_cast %45 : vector<8x8xf32> to vector<1x8x8xf32>
    tpu.vector_store %arg9[%c0_31, %c0_32, %c0_33], %52 {strides = array<i32>} : memref<1x8x16xf32, #tpu.memory_space<vmem>>, vector<1x8x8xf32>,
    %c0_34 = arith.constant 0 : index
    %c0_35 = arith.constant 0 : index
    %c8 = arith.constant 8 : index
    %53 = vector.load %arg9[%c0_34, %c0_35, %c8] : memref<1x8x16xf32, #tpu.memory_space<vmem>>, vector<1x8x8xf32>
    %54 = vector.shape_cast %53 : vector<1x8x8xf32> to vector<8x8xf32>
    %55 = vector.shape_cast %49 : vector<8x8xf32> to vector<1x8x8xf32>
    tpu.vector_store %arg9[%c0_34, %c0_35, %c8], %55 {strides = array<i32>} : memref<1x8x16xf32, #tpu.memory_space<vmem>>, vector<1x8x8xf32>,
    %56 = vector.extract_strided_slice %6 {offsets = [8, 0], sizes = [4, 8], strides = [1, 1]} : vector<12x8xf32> to vector<4x8xf32>
    %c0_36 = arith.constant 0 : index
    %c0_37 = arith.constant 0 : index
    %57 = vector.load %arg10[%c0_36, %c0_37] : memref<12x8xf32, #tpu.memory_space<vmem>>, vector<4x8xf32>
    tpu.vector_store %arg10[%c0_36, %c0_37], %56 {strides = array<i32>} : memref<12x8xf32, #tpu.memory_space<vmem>>, vector<4x8xf32>,
    return
  }
  func.func @transform_0(%arg0: i32, %arg1: i32) -> (i32, i32, i32) {
    %c0_i32 = arith.constant 0 : i32
    %c0_i32_0 = arith.constant 0 : i32
    return %arg0, %arg1, %c0_i32 : i32, i32, i32
  }
  func.func @transform_1(%arg0: i32, %arg1: i32) -> (i32, i32, i32) {
    %c0_i32 = arith.constant 0 : i32
    %c0_i32_0 = arith.constant 0 : i32
    return %arg0, %arg1, %c0_i32 : i32, i32, i32
  }
  func.func @transform_2(%arg0: i32, %arg1: i32) -> (i32, i32, i32) {
    %c0_i32 = arith.constant 0 : i32
    %c0_i32_0 = arith.constant 0 : i32
    %c0_i32_1 = arith.constant 0 : i32
    %c0_i32_2 = arith.constant 0 : i32
    return %c0_i32, %c0_i32_0, %c0_i32_1 : i32, i32, i32
  }
  func.func @transform_3(%arg0: i32, %arg1: i32) -> (i32, i32) {
    %c0_i32 = arith.constant 0 : i32
    %c0_i32_0 = arith.constant 0 : i32
    %c0_i32_1 = arith.constant 0 : i32
    return %c0_i32, %c0_i32_0 : i32, i32
  }
  func.func @transform_4(%arg0: i32, %arg1: i32) -> (i32, i32) {
    %c0_i32 = arith.constant 0 : i32
    %c0_i32_0 = arith.constant 0 : i32
    %c0_i32_1 = arith.constant 0 : i32
    return %c0_i32, %c0_i32_0 : i32, i32
  }
  func.func @transform_5(%arg0: i32, %arg1: i32) -> (i32, i32) {
    %c0_i32 = arith.constant 0 : i32
    %c0_i32_0 = arith.constant 0 : i32
    %c0_i32_1 = arith.constant 0 : i32
    return %c0_i32, %c0_i32_0 : i32, i32
  }
  func.func @transform_6(%arg0: i32, %arg1: i32) -> (i32, i32) {
    %c0_i32 = arith.constant 0 : i32
    %c0_i32_0 = arith.constant 0 : i32
    %c0_i32_1 = arith.constant 0 : i32
    return %c0_i32, %c0_i32_0 : i32, i32
  }
  func.func @transform_7(%arg0: i32, %arg1: i32) -> (i32, i32, i32) {
    %c0_i32 = arith.constant 0 : i32
    %c0_i32_0 = arith.constant 0 : i32
    return %arg0, %arg1, %c0_i32 : i32, i32, i32
  }
}

</mosaic_0001>

<llo_original>
// kernel: tpu_custom_call.1
$region0: #{tpu_custom_call.1}
  #allocation0 [shape = 'u32[]', space=smem, size = 0x4, offset = 0x4, fixed_abs, tag = 'smem constant byte address 0x4 - core index']
  #allocation1 [shape = 'u32[72,128]{1,0:T(1,128)}', space=vmem, size = 0x9000, scoped, tag = 'internal scratch']
  #allocation2 [shape = 'f32[12,8]{1,0:T(8,128)}', space=vmem, size = 0x2000, scoped, tag = 'scratch operand']
  %s0 = inlined_call_operand.vmem [shape: f32[2,16,8], index: 0, kind: input, shape index: {}]
  %s1 = inlined_call_operand.vmem [shape: f32[2,16,4], index: 1, kind: input, shape index: {}]
  %s2 = inlined_call_operand.vmem [shape: f32[3,8,16], index: 2, kind: input, shape index: {}]
  %s3 = inlined_call_operand.vmem [shape: f32[1,16], index: 3, kind: input, shape index: {}]
  %s4 = inlined_call_operand.vmem [shape: f32[4,16], index: 4, kind: input, shape index: {}]
  %s5 = inlined_call_operand.vmem [shape: f32[8,16], index: 5, kind: input, shape index: {}]
  %s6 = inlined_call_operand.vmem [shape: f32[1,16], index: 6, kind: input, shape index: {}]
  %s7 = inlined_call_operand.hbm [shape: f32[2,16,16], index: 7, kind: output, shape index: {}]
  %s8 = sld [smem:[#allocation0]]
  $region65: #{tpu_custom_call.1} parent=0
    _
  %s10 = ssub.s32 1, %s8
  %s11 = scalar_select 0, %s10, %s8
  $region1: #{tpu_custom_call.1} parent=0
    #allocation3 [shape = 'u8[8192]{0}', space=vmem, size = 0x2000, scoped, tag = 'output window, operand 0']
    #allocation4 [shape = 's32[2]{0}', space=sflag, size = 0x8, scoped, tag = 'scoped memory for tpu_custom_call.1']
    %12 = vsyncpa [#allocation4], 0
    %s13 = scalar_lea.sflag [#allocation4], 1
    %14 = vsyncpa %s13, 0
    loop: start=0, step=1, limit=6
    $region2: #{tpu_custom_call.1} parent=1 // loop_pre_header
      _
    $region3: #{tpu_custom_call.1} parent=1 // loop_header
      %s16 = sphi 0, %s20
      %p17 = scmp.ge.s32.totalorder %s16, 6
      %s23 = sphi 0, %s35
      %s24 = sphi 0, %s31
      %s25 = sphi 0, %s23
      %s26 = sphi 0, %s24
      %s27 = sphi 0, %s25
      %s28 = sphi 0, %s26
      %s40 = sphi 0, %s42
      %s43 = sphi 0, %s40
      %s44 = sphi 0, %s43
      %s60 = sphi 0, %s44
      %s68 = sphi 0, %s70
      %s71 = sphi 0, %s68
      %s72 = sphi 0, %s71
      %s88 = sphi 0, %s72
      %s92 = sphi 0, %s92
      %s94 = sphi 0, %s92
      %s95 = sphi 0, %s94
      %s109 = sphi 0, %s95
      %s113 = sphi 0, %s113
      %s115 = sphi 0, %s113
      %s116 = sphi 0, %s115
      %s130 = sphi 0, %s116
      %s134 = sphi 0, %s134
      %s136 = sphi 0, %s134
      %s137 = sphi 0, %s136
      %s151 = sphi 0, %s137
      %s155 = sphi 0, %s155
      %s157 = sphi 0, %s155
      %s158 = sphi 0, %s157
      %s172 = sphi 0, %s158
      %s176 = sphi 0, %s176
      %s178 = sphi 0, %s176
      %s179 = sphi 0, %s178
      %s193 = sphi 0, %s179
      %s201 = sphi 0, %s203
      %s204 = sphi 0, %s201
      %s205 = sphi 0, %s204
      %s221 = sphi 0, %s205
    $region4: #{tpu_custom_call.1} parent=1 // loop_header_branch
      %19 = sbr.rel (%p17) target = $region8
    $region5: #{tpu_custom_call.1} parent=1 // loop_body
      %s21 = ssub.s32 %s16, 1
      %s22 = ssub.s32 %s16, 2
      %s29 = sadd.s32 1, %s24
      %p30 = scmp.ge.s32.totalorder %s29, 2
      %s31 = scalar_select %p30, 0, %s29
      %s32 = sadd.s32 1, %s23
      %s33 = scalar_select %p30, %s32, %s23
      %p34 = scmp.ge.s32.totalorder %s33, 2
      %s35 = scalar_select %p34, 0, %s33
      %s36 = ssub.s32 %s23, %s35
      %s37 = ssub.s32 %s24, %s31
      %s38 = sor.u32 %s36, %s37
      %p39 = scmp.eq.s32.totalorder %s38, 0
      %s41 = sadd.s32 %s40, 1
      %s42 = scalar_select %p39, %s40, %s41
      %p45 = pneg %p39
      %p46 = scmp.eq.s32.totalorder %s16, 3
      %p47 = por %p45, %p46
      %p48 = scmp.ne.s32.totalorder %s40, %s43
      %p49 = scmp.eq.s32.totalorder %s16, 0
      %p50 = por %p48, %p49
      %p51 = scmp.ne.s32.totalorder %s40, %s43
      %p52 = scmp.eq.s32.totalorder %s21, 3
      %p53 = por %p51, %p52
      %p54 = scmp.ne.s32.totalorder %s43, %s44
      %p55 = scmp.eq.s32.totalorder %s21, 0
      %p56 = por %p54, %p55
      %p57 = scmp.ne.s32.totalorder %s43, %s44
      %p58 = scmp.eq.s32.totalorder %s22, 3
      %p59 = por %p57, %p58
      %p61 = scmp.ne.s32.totalorder %s44, %s60
      %p62 = scmp.eq.s32.totalorder %s22, 0
      %p63 = por %p61, %p62
      %s64 = ssub.s32 %s23, %s35
      %s65 = ssub.s32 %s24, %s31
      %s66 = sor.u32 %s64, %s65
      %p67 = scmp.eq.s32.totalorder %s66, 0
      %s69 = sadd.s32 %s68, 1
      %s70 = scalar_select %p67, %s68, %s69
      %p73 = pneg %p67
      %p74 = scmp.eq.s32.totalorder %s16, 3
      %p75 = por %p73, %p74
      %p76 = scmp.ne.s32.totalorder %s68, %s71
      %p77 = scmp.eq.s32.totalorder %s16, 0
      %p78 = por %p76, %p77
      %p79 = scmp.ne.s32.totalorder %s68, %s71
      %p80 = scmp.eq.s32.totalorder %s21, 3
      %p81 = por %p79, %p80
      %p82 = scmp.ne.s32.totalorder %s71, %s72
      %p83 = scmp.eq.s32.totalorder %s21, 0
      %p84 = por %p82, %p83
      %p85 = scmp.ne.s32.totalorder %s71, %s72
      %p86 = scmp.eq.s32.totalorder %s22, 3
      %p87 = por %p85, %p86
      %p89 = scmp.ne.s32.totalorder %s72, %s88
      %p90 = scmp.eq.s32.totalorder %s22, 0
      %p91 = por %p89, %p90
      %s93 = sadd.s32 %s92, 1
      %p96 = scmp.eq.s32.totalorder %s16, 3
      %p97 = scmp.ne.s32.totalorder %s92, %s94
      %p98 = scmp.eq.s32.totalorder %s16, 0
      %p99 = por %p97, %p98
      %p100 = scmp.ne.s32.totalorder %s92, %s94
      %p101 = scmp.eq.s32.totalorder %s21, 3
      %p102 = por %p100, %p101
      %p103 = scmp.ne.s32.totalorder %s94, %s95
      %p104 = scmp.eq.s32.totalorder %s21, 0
      %p105 = por %p103, %p104
      %p106 = scmp.ne.s32.totalorder %s94, %s95
      %p107 = scmp.eq.s32.totalorder %s22, 3
      %p108 = por %p106, %p107
      %p110 = scmp.ne.s32.totalorder %s95, %s109
      %p111 = scmp.eq.s32.totalorder %s22, 0
      %p112 = por %p110, %p111
      %s114 = sadd.s32 %s113, 1
      %p117 = scmp.eq.s32.totalorder %s16, 3
      %p118 = scmp.ne.s32.totalorder %s113, %s115
      %p119 = scmp.eq.s32.totalorder %s16, 0
      %p120 = por %p118, %p119
      %p121 = scmp.ne.s32.totalorder %s113, %s115
      %p122 = scmp.eq.s32.totalorder %s21, 3
      %p123 = por %p121, %p122
      %p124 = scmp.ne.s32.totalorder %s115, %s116
      %p125 = scmp.eq.s32.totalorder %s21, 0
      %p126 = por %p124, %p125
      %p127 = scmp.ne.s32.totalorder %s115, %s116
      %p128 = scmp.eq.s32.totalorder %s22, 3
      %p129 = por %p127, %p128
      %p131 = scmp.ne.s32.totalorder %s116, %s130
      %p132 = scmp.eq.s32.totalorder %s22, 0
      %p133 = por %p131, %p132
      %s135 = sadd.s32 %s134, 1
      %p138 = scmp.eq.s32.totalorder %s16, 3
      %p139 = scmp.ne.s32.totalorder %s134, %s136
      %p140 = scmp.eq.s32.totalorder %s16, 0
      %p141 = por %p139, %p140
      %p142 = scmp.ne.s32.totalorder %s134, %s136
      %p143 = scmp.eq.s32.totalorder %s21, 3
      %p144 = por %p142, %p143
      %p145 = scmp.ne.s32.totalorder %s136, %s137
      %p146 = scmp.eq.s32.totalorder %s21, 0
      %p147 = por %p145, %p146
      %p148 = scmp.ne.s32.totalorder %s136, %s137
      %p149 = scmp.eq.s32.totalorder %s22, 3
      %p150 = por %p148, %p149
      %p152 = scmp.ne.s32.totalorder %s137, %s151
      %p153 = scmp.eq.s32.totalorder %s22, 0
      %p154 = por %p152, %p153
      %s156 = sadd.s32 %s155, 1
      %p159 = scmp.eq.s32.totalorder %s16, 3
      %p160 = scmp.ne.s32.totalorder %s155, %s157
      %p161 = scmp.eq.s32.totalorder %s16, 0
      %p162 = por %p160, %p161
      %p163 = scmp.ne.s32.totalorder %s155, %s157
      %p164 = scmp.eq.s32.totalorder %s21, 3
      %p165 = por %p163, %p164
      %p166 = scmp.ne.s32.totalorder %s157, %s158
      %p167 = scmp.eq.s32.totalorder %s21, 0
      %p168 = por %p166, %p167
      %p169 = scmp.ne.s32.totalorder %s157, %s158
      %p170 = scmp.eq.s32.totalorder %s22, 3
      %p171 = por %p169, %p170
      %p173 = scmp.ne.s32.totalorder %s158, %s172
      %p174 = scmp.eq.s32.totalorder %s22, 0
      %p175 = por %p173, %p174
      %s177 = sadd.s32 %s176, 1
      %p180 = scmp.eq.s32.totalorder %s16, 3
      %p181 = scmp.ne.s32.totalorder %s176, %s178
      %p182 = scmp.eq.s32.totalorder %s16, 0
      %p183 = por %p181, %p182
      %p184 = scmp.ne.s32.totalorder %s176, %s178
      %p185 = scmp.eq.s32.totalorder %s21, 3
      %p186 = por %p184, %p185
      %p187 = scmp.ne.s32.totalorder %s178, %s179
      %p188 = scmp.eq.s32.totalorder %s21, 0
      %p189 = por %p187, %p188
      %p190 = scmp.ne.s32.totalorder %s178, %s179
      %p191 = scmp.eq.s32.totalorder %s22, 3
      %p192 = por %p190, %p191
      %p194 = scmp.ne.s32.totalorder %s179, %s193
      %p195 = scmp.eq.s32.totalorder %s22, 0
      %p196 = por %p194, %p195
      %s197 = ssub.s32 %s23, %s35
      %s198 = ssub.s32 %s24, %s31
      %s199 = sor.u32 %s197, %s198
      %p200 = scmp.eq.s32.totalorder %s199, 0
      %s202 = sadd.s32 %s201, 1
      %s203 = scalar_select %p200, %s201, %s202
      %p206 = pneg %p200
      %p207 = scmp.eq.s32.totalorder %s16, 3
      %p208 = por %p206, %p207
      %p209 = scmp.ne.s32.totalorder %s201, %s204
      %p210 = scmp.eq.s32.totalorder %s16, 0
      %p211 = por %p209, %p210
      %p212 = scmp.ne.s32.totalorder %s201, %s204
      %p213 = scmp.eq.s32.totalorder %s21, 3
      %p214 = por %p212, %p213
      %p215 = scmp.ne.s32.totalorder %s204, %s205
      %p216 = scmp.eq.s32.totalorder %s21, 0
      %p217 = por %p215, %p216
      %p218 = scmp.ne.s32.totalorder %s204, %s205
      %p219 = scmp.eq.s32.totalorder %s22, 3
      %p220 = por %p218, %p219
      %p222 = scmp.ne.s32.totalorder %s205, %s221
      %p223 = scmp.eq.s32.totalorder %s22, 0
      %p224 = por %p222, %p223
      %p225 = scmp.le.s32.totalorder 1, %s16
      %p226 = scmp.lt.s32.totalorder %s16, 5
      %p227 = pnand %p225, %p226
      %p228 = pneg %p227
      // Predicated region
      $region9: #{tpu_custom_call.1} parent=5 // pred_check
        _
      $region10: #{tpu_custom_call.1} parent=5 // pred_check_branch
        %230 = sbr.rel (%p227) target = $region12
      $region11: #{tpu_custom_call.1} parent=5 // pred_region
        %s231 = ssub.s32 %s16, 1
        // Predicated region
        $region13: #{tpu_custom_call.1} parent=11 // pred_check
          %p232 = pneg %p105
        $region14: #{tpu_custom_call.1} parent=11 // pred_check_branch
          %234 = sbr.rel (%p232) target = $region16
        $region15: #{tpu_custom_call.1} parent=11 // pred_region
          _
        $region16: #{tpu_custom_call.1} parent=11 // pred_fallthru
          _
        // Predicated region
        $region17: #{tpu_custom_call.1} parent=11 // pred_check
          %p235 = pneg %p126
        $region18: #{tpu_custom_call.1} parent=11 // pred_check_branch
          %237 = sbr.rel (%p235) target = $region20
        $region19: #{tpu_custom_call.1} parent=11 // pred_region
          _
        $region20: #{tpu_custom_call.1} parent=11 // pred_fallthru
          _
        // Predicated region
        $region21: #{tpu_custom_call.1} parent=11 // pred_check
          %p238 = pneg %p147
        $region22: #{tpu_custom_call.1} parent=11 // pred_check_branch
          %240 = sbr.rel (%p238) target = $region24
        $region23: #{tpu_custom_call.1} parent=11 // pred_region
          _
        $region24: #{tpu_custom_call.1} parent=11 // pred_fallthru
          _
        // Predicated region
        $region25: #{tpu_custom_call.1} parent=11 // pred_check
          %p241 = pneg %p168
        $region26: #{tpu_custom_call.1} parent=11 // pred_check_branch
          %243 = sbr.rel (%p241) target = $region28
        $region27: #{tpu_custom_call.1} parent=11 // pred_region
          _
        $region28: #{tpu_custom_call.1} parent=11 // pred_fallthru
          _
        // Predicated region
        $region29: #{tpu_custom_call.1} parent=11 // pred_check
          %p244 = pneg %p189
        $region30: #{tpu_custom_call.1} parent=11 // pred_check_branch
          %246 = sbr.rel (%p244) target = $region32
        $region31: #{tpu_custom_call.1} parent=11 // pred_region
          _
        $region32: #{tpu_custom_call.1} parent=11 // pred_fallthru
          _
      $region12: #{tpu_custom_call.1} parent=5 // pred_fallthru
        _
      %p247 = scmp.lt.s32.totalorder %s16, 4
      // Predicated region
      $region33: #{tpu_custom_call.1} parent=5 // pred_check
        %p248 = pneg %p247
      $region34: #{tpu_custom_call.1} parent=5 // pred_check_branch
        %250 = sbr.rel (%p248) target = $region36
      $region35: #{tpu_custom_call.1} parent=5 // pred_region
        // Predicated region
        $region37: #{tpu_custom_call.1} parent=35 // pred_check
          %p251 = pneg %p50
        $region38: #{tpu_custom_call.1} parent=35 // pred_check_branch
          %253 = sbr.rel (%p251) target = $region40
        $region39: #{tpu_custom_call.1} parent=35 // pred_region
          %p254 = scmp.lt.s32.totalorder %s23, 1
          %s255 = scalar_select %p254, %s23, 1
          %p256 = scmp.lt.s32.totalorder %s24, 1
          %s257 = scalar_select %p256, %s24, 1
          %s258 = smul.addr %s255, 2
          %s259 = sadd.s32 %s257, %s258
          %s260 = smul.addr %s259, 8
          %s261 = scalar_lea.vmem %s0, %s260
        $region40: #{tpu_custom_call.1} parent=35 // pred_fallthru
          _
        // Predicated region
        $region41: #{tpu_custom_call.1} parent=35 // pred_check
          %p262 = pneg %p78
        $region42: #{tpu_custom_call.1} parent=35 // pred_check_branch
          %264 = sbr.rel (%p262) target = $region44
        $region43: #{tpu_custom_call.1} parent=35 // pred_region
          %p265 = scmp.lt.s32.totalorder %s23, 1
          %s266 = scalar_select %p265, %s23, 1
          %p267 = scmp.lt.s32.totalorder %s24, 1
          %s268 = scalar_select %p267, %s24, 1
          %s269 = smul.addr %s266, 2
          %s270 = sadd.s32 %s268, %s269
          %s271 = smul.addr %s270, 8
          %s272 = scalar_lea.vmem %s1, %s271
        $region44: #{tpu_custom_call.1} parent=35 // pred_fallthru
          _
      $region36: #{tpu_custom_call.1} parent=5 // pred_fallthru
        _
      %p273 = scmp.le.s32.totalorder 1, %s16
      %p274 = scmp.lt.s32.totalorder %s16, 5
      %p275 = pnand %p273, %p274
      %p276 = pneg %p275
      // Predicated region
      $region45: #{tpu_custom_call.1} parent=5 // pred_check
        _
      $region46: #{tpu_custom_call.1} parent=5 // pred_check_branch
        %278 = sbr.rel (%p275) target = $region48
      $region47: #{tpu_custom_call.1} parent=5 // pred_region
        %s279 = ssub.s32 %s16, 1
        %p280 = scmp.lt.s32.totalorder %s25, 1
        %s281 = scalar_select %p280, %s25, 1
        %p282 = scmp.lt.s32.totalorder %s26, 1
        %s283 = scalar_select %p282, %s26, 1
        %s284 = smul.addr %s281, 2
        %s285 = sadd.s32 %s283, %s284
        %s286 = smul.addr %s285, 8
        %s287 = scalar_lea.vmem %s0, %s286
        %p288 = pneg %p56
        %p289 = pneg %p53
        %p290 = scmp.lt.s32.totalorder %s25, 1
        %s291 = scalar_select %p290, %s25, 1
        %p292 = scmp.lt.s32.totalorder %s26, 1
        %s293 = scalar_select %p292, %s26, 1
        %s294 = smul.addr %s291, 2
        %s295 = sadd.s32 %s293, %s294
        %s296 = smul.addr %s295, 8
        %s297 = scalar_lea.vmem %s1, %s296
        %p298 = pneg %p84
        %p299 = pneg %p81
        %p300 = pneg %p105
        %p301 = pneg %p102
        %p302 = pneg %p126
        %p303 = pneg %p123
        %p304 = pneg %p147
        %p305 = pneg %p144
        %p306 = pneg %p168
        %p307 = pneg %p165
        %p308 = pneg %p189
        %p309 = pneg %p186
        %p310 = pneg %p217
        %p311 = pneg %p214
        %s312 = sand.u32 %s204, 1
        %s313 = scalar_lea.sflag [#allocation4], %s312
        %s314 = sand.u32 %s204, 1
        %s315 = smul.addr %s314, 8
        %s316 = scalar_lea.vmem [#allocation3], %s315
        %p317 = scmp.lt.s32.totalorder %s25, 1
        %s318 = scalar_select %p317, %s25, 1
        %p319 = scmp.lt.s32.totalorder %s26, 1
        %s320 = scalar_select %p319, %s26, 1
        %s321 = smul.addr %s318, 2
        %s322 = sadd.s32 %s320, %s321
        %s323 = smul.addr %s322, 8
        %s324 = scalar_lea.vmem %s0, %s323
        %p325 = scmp.lt.s32.totalorder %s25, 1
        %s326 = scalar_select %p325, %s25, 1
        %p327 = scmp.lt.s32.totalorder %s26, 1
        %s328 = scalar_select %p327, %s26, 1
        %s329 = smul.addr %s326, 2
        %s330 = sadd.s32 %s328, %s329
        %s331 = smul.addr %s330, 8
        %s332 = scalar_lea.vmem %s1, %s331
        %v333 = vld [vmem:[%s324] sm:$0xff]
        %p334 = scmp.eq.s32.totalorder %s26, 0
        // Predicated region
        $region49: #{tpu_custom_call.1} parent=47 // pred_check
          %p335 = pneg %p334
        $region50: #{tpu_custom_call.1} parent=47 // pred_check_branch
          %337 = sbr.rel (%p335) target = $region52
        $region51: #{tpu_custom_call.1} parent=47 // pred_region
          %vm338 = vcmask 60416
          %339 = vst.msk [vmem:[#allocation2] sm:$0xf] %vm338, 0.0
        $region52: #{tpu_custom_call.1} parent=47 // pred_fallthru
          _
        %vm340 = vcmask 64512
        %341 = vst.msk [vmem:[#allocation2 + $0x4] sm:$0xff] %vm340, %v333
        %v342 = vld [vmem:[#allocation2] sm:$0xff]
        %v343 = vld [vmem:[#allocation2 + $0x8] sm:$0xf]
        %v344 = vld [vmem:[%s2] sm:$0xff]
        %s345 = scalar_lea.vmem %s2, 8
        %v346 = vld [vmem:[%s345] sm:$0xff]
        %vm349 = vcmask 1045504
        %v350 = vrot.slane %v342, 2
        %v351 = vrot.slane %v343, 2
        %v352 = vsel %vm349, %v350, %v351
        %v353 = vsel %vm340, %v352, 0
        %355 = vmatpush.msra.mxu0 0.0
        %356 = vmatpush.msra.mxu0 0.0
        %357 = vmatpush.msra.mxu0 0.0
        %358 = vmatpush.msra.mxu0 0.0
        %359 = vmatpush.msra.mxu0 0.0
        %360 = vmatpush.msra.mxu0 0.0
        %361 = vmatpush.msra.mxu0 0.0
        %362 = vmatpush.msra.mxu0 0.0
        %363 = vmatpush.msra.mxu0 0.0
        %364 = vmatpush.msra.mxu0 0.0
        %365 = vmatpush.msra.mxu0 0.0
        %366 = vmatpush.msra.mxu0 0.0
        %367 = vmatpush.msra.mxu0 0.0
        %368 = vmatpush.msra.mxu0 0.0
        %369 = vmatpush.msra.mxu0 0.0
        %370 = vmatpush.msra.mxu0 %v346
        %371 = vmatmul.f32.gmra.mxu0 %v353
        %v372 = vpop.f32.mrf.mxu0
        %v373 = vadd.f32 0.0, %v372
        %374 = vdwg.mxu0
        %v375 = vsel %vm340, %v342, 0
        %377 = vmatpush.msra.mxu0 0.0
        %378 = vmatpush.msra.mxu0 0.0
        %379 = vmatpush.msra.mxu0 0.0
        %380 = vmatpush.msra.mxu0 0.0
        %381 = vmatpush.msra.mxu0 0.0
        %382 = vmatpush.msra.mxu0 0.0
        %383 = vmatpush.msra.mxu0 0.0
        %384 = vmatpush.msra.mxu0 0.0
        %385 = vmatpush.msra.mxu0 0.0
        %386 = vmatpush.msra.mxu0 0.0
        %387 = vmatpush.msra.mxu0 0.0
        %388 = vmatpush.msra.mxu0 0.0
        %389 = vmatpush.msra.mxu0 0.0
        %390 = vmatpush.msra.mxu0 0.0
        %391 = vmatpush.msra.mxu0 0.0
        %392 = vmatpush.msra.mxu0 %v344
        %393 = vmatmul.f32.gmra.mxu0 %v375
        %v394 = vpop.f32.mrf.mxu0
        %v395 = vadd.f32 %v373, %v394
        %396 = vdwg.mxu0
        %s397 = scalar_lea.vmem %s2, 16
        %v398 = vld [vmem:[%s397] sm:$0xff]
        %vm399 = vcmask 1043456
        %v400 = vrot.slane %v342, 4
        %v401 = vrot.slane %v343, 4
        %v402 = vsel %vm399, %v400, %v401
        %v403 = vsel %vm340, %v402, 0
        %405 = vmatpush.msra.mxu0 0.0
        %406 = vmatpush.msra.mxu0 0.0
        %407 = vmatpush.msra.mxu0 0.0
        %408 = vmatpush.msra.mxu0 0.0
        %409 = vmatpush.msra.mxu0 0.0
        %410 = vmatpush.msra.mxu0 0.0
        %411 = vmatpush.msra.mxu0 0.0
        %412 = vmatpush.msra.mxu0 0.0
        %413 = vmatpush.msra.mxu0 0.0
        %414 = vmatpush.msra.mxu0 0.0
        %415 = vmatpush.msra.mxu0 0.0
        %416 = vmatpush.msra.mxu0 0.0
        %417 = vmatpush.msra.mxu0 0.0
        %418 = vmatpush.msra.mxu0 0.0
        %419 = vmatpush.msra.mxu0 0.0
        %420 = vmatpush.msra.mxu0 %v398
        %421 = vmatmul.f32.gmra.mxu0 %v403
        %v422 = vpop.f32.mrf.mxu0
        %v423 = vadd.f32 0.0, %v422
        %424 = vdwg.mxu0
        %v425 = vadd.f32 %v395, %v423
        %v426 = vld [vmem:[%s332] sm:$0xff]
        %v427 = vld [vmem:[%s4] sm:$0xf]
        %vm428 = vcmask 31744
        %v430 = vsel %vm428, %v426, 0
        %v433 = vsel %vm399, %v427, 0
        %435 = vmatpush.msra.mxu0 0.0
        %436 = vmatpush.msra.mxu0 0.0
        %437 = vmatpush.msra.mxu0 0.0
        %438 = vmatpush.msra.mxu0 0.0
        %439 = vmatpush.msra.mxu0 0.0
        %440 = vmatpush.msra.mxu0 0.0
        %441 = vmatpush.msra.mxu0 0.0
        %442 = vmatpush.msra.mxu0 0.0
        %443 = vmatpush.msra.mxu0 0.0
        %444 = vmatpush.msra.mxu0 0.0
        %445 = vmatpush.msra.mxu0 0.0
        %446 = vmatpush.msra.mxu0 0.0
        %447 = vmatpush.msra.mxu0 0.0
        %448 = vmatpush.msra.mxu0 0.0
        %449 = vmatpush.msra.mxu0 0.0
        %450 = vmatpush.msra.mxu0 %v433
        %451 = vmatmul.f32.gmra.mxu0 %v430
        %v452 = vpop.f32.mrf.mxu0
        %v453 = vadd.f32 0.0, %v452
        %454 = vdwg.mxu0
        %v455 = vadd.f32 %v425, %v453
        %v456 = vld [vmem:[%s3] sm:$0x1]
        %v458 = vperm.slane %v456, 0
        %v460 = vadd.f32 %v455, %v458
        %v461 = vtanh.pop %v460
        %v462 = vxor.u32 %v460, 2147483648
        %v463 = vmul.f32 %v462, 1.442695
        %v464 = vpow.pop %v463
        %v465 = vadd.f32 %v464, 1.0
        %v466 = vrcp.pop %v465
        %v467 = vmul.f32 %v465, %v466
        %v468 = vsub.f32 1.0, %v467
        %v469 = vmul.f32 %v466, %v468
        %v470 = vadd.f32 %v466, %v469
        %vm471 = vweird.f32 %v465
        %vm472 = vweird.f32 %v466
        %vm473 = vmor %vm471, %vm472
        %v474 = vsel %vm473, %v466, %v470
        %v475 = vand.u32 2147483647, %v465
        %vm476 = vcmp.eq.f32.partialorder %v475, 8.507059e+37
        %v477 = vand.u32 %v465, 2147483648
        %v478 = vor.u32 1.1754944e-38, %v477
        %v479 = vsel %vm476, %v478, %v474
        %v480 = vmul.f32 1.0, %v479
        %482 = vrot.lane.b32.xlu0 %v480, 120
        %v483 = vpop.permute.xlu0 %482
        %v485 = vmul.f32 %v461, %v483
        %v486 = vld [vmem:[%s5] sm:$0xff]
        %v487 = vld [vmem:[%s6] sm:$0x1]
        %v489 = vperm.slane %v487, 0
        %v492 = vsel %vm340, %v485, 0
        %494 = vmatpush.msra.mxu0 0.0
        %495 = vmatpush.msra.mxu0 0.0
        %496 = vmatpush.msra.mxu0 0.0
        %497 = vmatpush.msra.mxu0 0.0
        %498 = vmatpush.msra.mxu0 0.0
        %499 = vmatpush.msra.mxu0 0.0
        %500 = vmatpush.msra.mxu0 0.0
        %501 = vmatpush.msra.mxu0 0.0
        %502 = vmatpush.msra.mxu0 0.0
        %503 = vmatpush.msra.mxu0 0.0
        %504 = vmatpush.msra.mxu0 0.0
        %505 = vmatpush.msra.mxu0 0.0
        %506 = vmatpush.msra.mxu0 0.0
        %507 = vmatpush.msra.mxu0 0.0
        %508 = vmatpush.msra.mxu0 0.0
        %509 = vmatpush.msra.mxu0 %v486
        %510 = vmatmul.f32.gmra.mxu0 %v492
        %v511 = vpop.f32.mrf.mxu0
        %v512 = vadd.f32 %v489, %v511
        %513 = vdwg.mxu0
        %515 = vrot.lane.b32.xlu0 %v333, 8
        %v516 = vpop.permute.xlu0 %515
        %v518 = vadd.f32 %v512, %v516
        %v519 = vmul.f32 %v518, 0.70710677
        %520 = vst.msk [vmem:[%s316] sm:$0xff] %vm340, %v512
        %vm521 = vcmask 130112
        %522 = vst.msk [vmem:[%s316] sm:$0xff] %vm521, %v519
        %vm523 = vcmask 60416
        %524 = vst.msk [vmem:[#allocation2] sm:$0xf] %vm523, %v343
        %s525 = sand.u32 %s204, 1
        %s526 = scalar_lea.sflag [#allocation4], %s525
        %s527 = sand.u32 %s204, 1
        %s528 = smul.addr %s527, 8
        %s529 = scalar_lea.vmem [#allocation3], %s528
        // Predicated region
        $region53: #{tpu_custom_call.1} parent=47 // pred_check
          %p530 = pneg %p214
        $region54: #{tpu_custom_call.1} parent=47 // pred_check_branch
          %532 = sbr.rel (%p530) target = $region56
        $region55: #{tpu_custom_call.1} parent=47 // pred_region
          %534 = vsyncadd %s526, 0
          %s535 = smul.addr %s25, 2
          %s536 = sadd.s32 %s26, %s535
          %s537 = smul.addr %s536, 8
          %s538 = scalar_lea.hbm %s7, %s537
          %s540 = sshll.u32 %s529, 4
          %s541 = int_to_ptr.vmem [resolvable:$true] %s540
          %s542 = sshll.u32 %s538, 4
          %s543 = int_to_ptr.hbm [resolvable:$true] %s542
          %545 = dma.vmem_to_hbm [thread:$0]  %s541, 128, %s543, %s526
        $region56: #{tpu_custom_call.1} parent=47 // pred_fallthru
          _
      $region48: #{tpu_custom_call.1} parent=5 // pred_fallthru
        _
      %p546 = scmp.le.s32.totalorder 2, %s16
      // Predicated region
      $region57: #{tpu_custom_call.1} parent=5 // pred_check
        %p547 = pneg %p546
      $region58: #{tpu_custom_call.1} parent=5 // pred_check_branch
        %549 = sbr.rel (%p547) target = $region60
      $region59: #{tpu_custom_call.1} parent=5 // pred_region
        %s550 = ssub.s32 %s16, 2
        // Predicated region
        $region61: #{tpu_custom_call.1} parent=59 // pred_check
          %p551 = pneg %p220
        $region62: #{tpu_custom_call.1} parent=59 // pred_check_branch
          %553 = sbr.rel (%p551) target = $region64
        $region63: #{tpu_custom_call.1} parent=59 // pred_region
          %s554 = sand.u32 %s205, 1
          %s555 = scalar_lea.sflag [#allocation4], %s554
          %s556 = sand.u32 %s205, 1
          %s557 = smul.addr %s556, 8
          %s558 = scalar_lea.vmem [#allocation3], %s557
          %560 = dma.done %s555, 128
        $region64: #{tpu_custom_call.1} parent=59 // pred_fallthru
          _
      $region60: #{tpu_custom_call.1} parent=5 // pred_fallthru
        _
    $region6: #{tpu_custom_call.1} parent=1 // loop_footer
      %s20 = sadd.s32 1, %s16
    $region7: #{tpu_custom_call.1} parent=1 // loop_footer_branch
      %15 = sbr.rel target = $region3
    $region8: #{tpu_custom_call.1} parent=1 // loop_exit
      _
    %561 = vsyncpa [#allocation4], 1
    %s562 = scalar_lea.sflag [#allocation4], 1
    %563 = vsyncpa %s562, 1

</llo_original>
